<compile_context>
chip_gen: v5e
topology: v5e:2x2
jax: 0.10.0
libtpu: 0.0.40
codegen_flags: <defaults>
</compile_context>

<pallas_src>
import math
import jax
import jax.numpy as jnp
from jax import lax
from jax.experimental import pallas as pl
from jax.experimental.pallas import tpu as pltpu

# ---------------- model sizes (small, consistent with the module) ------------
B = 2        # batch
S = 8        # sequence length (multiple of 8 so reshapes stay on sublane tiles)
H = 128      # hidden size   (stand-in for 768)
F = 256      # FFN size      (stand-in for 3072)
L = 7        # num_labels
LPAD = 128   # lane-dense padded logits width (sliced back to L outside)
V = 64       # vocab size for the synthetic embedding table

W_SLAB_COLS = 3 * H + H + F + LPAD     # 896: [wq|wk|wv | wo | w1 | wfc]


def _layernorm(x, g, b, eps=1e-5):
    mu = jnp.mean(x, axis=-1, keepdims=True)
    var = jnp.mean((x - mu) ** 2, axis=-1, keepdims=True)
    return (x - mu) * lax.rsqrt(var + eps) * g + b


def roberta_attention_kernel(emb_ref, mask_ref, w_ref, w2_ref, p_ref, logits_ref):
    """Single-invocation kernel: everything resident in VMEM (shapes are tiny)."""
    scale = 1.0 / math.sqrt(H)
    bf16 = jnp.bfloat16

    x = emb_ref[...]                                   # (B*S, H) f32
    pv = p_ref[...]                                    # (8, 3H)  f32 param slab

    # static slices of the packed small-parameter slab
    bqkv = pv[0:1, :]                                  # (1, 3H)
    bo = pv[1:2, 0:H]
    ln1g = pv[1:2, H:2 * H]
    ln1b = pv[1:2, 2 * H:3 * H]
    b1 = pv[2:3, 0:F]
    b2 = pv[2:3, F:F + H]
    ln2g = pv[3:4, 0:H]
    ln2b = pv[3:4, H:2 * H]
    wattn = pv[3:4, 2 * H:3 * H].reshape(1, 1, H)      # pooling score vector
    bfc = pv[4:5, 0:LPAD]
    battn = pv[4:5, H:H + 1]                           # pooling score bias (1,1)

    # ---- fused QKV projection: one (B*S, H) x (H, 3H) bf16 MXU pass ---------
    qkv = jnp.dot(x.astype(bf16), w_ref[:, 0:3 * H],
                  preferred_element_type=jnp.float32) + bqkv
    q = qkv[:, 0 * H:1 * H].reshape(B, S, H).astype(bf16)
    k = qkv[:, 1 * H:2 * H].reshape(B, S, H).astype(bf16)
    v = qkv[:, 2 * H:3 * H].reshape(B, S, H).astype(bf16)

    # ---- batched self-attention core (synthetic encoder layer) --------------
    scores = jnp.einsum("bqd,bkd->bqk", q, k,
                        preferred_element_type=jnp.float32) * scale
    scores = scores + (mask_ref[...][:, None, :] - 1.0) * 1e9     # (B,1,S) mask
    m = jnp.max(scores, axis=-1, keepdims=True)
    e = jnp.exp(scores - m)
    attn = e * pl.reciprocal(jnp.sum(e, axis=-1, keepdims=True), approx=True)
    ctx = jnp.einsum("bqk,bkd->bqd", attn.astype(bf16), v,
                     preferred_element_type=jnp.float32).reshape(B * S, H)

    attn_out = jnp.dot(ctx.astype(bf16), w_ref[:, 3 * H:4 * H],
                       preferred_element_type=jnp.float32) + bo
    x = _layernorm(x + attn_out, ln1g, ln1b)

    h1 = jnp.dot(x.astype(bf16), w_ref[:, 4 * H:4 * H + F],
                 preferred_element_type=jnp.float32) + b1
    h1 = jax.nn.gelu(h1, approximate=True)
    ffn = jnp.dot(h1.astype(bf16), w2_ref[...],
                  preferred_element_type=jnp.float32) + b2
    h = _layernorm(x + ffn, ln2g, ln2b)                # (B*S, H)
    hb = h.reshape(B, S, H)

    # ---- attention pooling head (exact semantics of the PyTorch module) -----
    # weights = softmax(self.attention(hidden_states), dim=1)   (seq axis)
    # Lane-dense: score is (B, S) with S on lanes; softmax over axis=-1.
    # The PyTorch reference applies NO attention_mask here, so neither do we.
    s = jnp.sum(hb * wattn, axis=-1) + battn                           # (B, S)
    m2 = jnp.max(s, axis=-1, keepdims=True)
    e2 = jnp.exp(s - m2)
    w = e2 * pl.reciprocal(jnp.sum(e2, axis=-1, keepdims=True), approx=True)
    # context_vector = sum(weights * hidden_states, dim=1)
    context = jnp.sum(w[:, :, None] * hb, axis=1)                      # (B, H)
    # logits = self.fc(context_vector)   (fc weight padded to LPAD lanes)
    logits_ref[...] = jnp.dot(context.astype(bf16),
                              w_ref[:, 4 * H + F:4 * H + F + LPAD],
                              preferred_element_type=jnp.float32) + bfc


def init_params(key):
    ks = jax.random.split(key, 12)

    def n(k, shape, s=0.02):
        return (s * jax.random.normal(k, shape)).astype(jnp.float32)

    return {
        "emb_table": n(ks[0], (V, H)),
        "pos_table": n(ks[1], (S, H)),
        "wq": n(ks[2], (H, H)), "bq": jnp.zeros((1, H), jnp.float32),
        "wk": n(ks[3], (H, H)), "bk": jnp.zeros((1, H), jnp.float32),
        "wv": n(ks[4], (H, H)), "bv": jnp.zeros((1, H), jnp.float32),
        "wo": n(ks[5], (H, H)), "bo": jnp.zeros((1, H), jnp.float32),
        "ln1g": jnp.ones((1, H), jnp.float32), "ln1b": jnp.zeros((1, H), jnp.float32),
        "w1": n(ks[6], (H, F)), "b1": jnp.zeros((1, F), jnp.float32),
        "w2": n(ks[7], (F, H)), "b2": jnp.zeros((1, H), jnp.float32),
        "ln2g": jnp.ones((1, H), jnp.float32), "ln2b": jnp.zeros((1, H), jnp.float32),
        "wattn": n(ks[8], (H, 1)), "battn": jnp.zeros((1, 1), jnp.float32),
        "wfc": n(ks[9], (H, L)), "bfc": jnp.zeros((1, L), jnp.float32),
    }


def pack_params(p):
    """Wrapper-side packing: 2 weight slabs (bf16) + 1 small-param slab (f32)."""
    bf16 = jnp.bfloat16

    # (H, 896) bf16 weight slab: [wq | wk | wv | wo | w1 | wfc_pad]
    wfc_pad = jnp.zeros((H, LPAD), jnp.float32).at[:, :L].set(p["wfc"])
    w_slab = jnp.concatenate(
        [p["wq"], p["wk"], p["wv"], p["wo"], p["w1"], wfc_pad], axis=1
    ).astype(bf16)
    assert w_slab.shape == (H, W_SLAB_COLS)

    # (8, 3H) f32 small-parameter slab (biases, LN params, pooling head)
    pv = jnp.zeros((8, 3 * H), jnp.float32)
    pv = pv.at[0, :].set(jnp.concatenate([p["bq"], p["bk"], p["bv"]], axis=1)[0])
    pv = pv.at[1, 0:H].set(p["bo"][0])
    pv = pv.at[1, H:2 * H].set(p["ln1g"][0])
    pv = pv.at[1, 2 * H:3 * H].set(p["ln1b"][0])
    pv = pv.at[2, 0:F].set(p["b1"][0])
    pv = pv.at[2, F:F + H].set(p["b2"][0])
    pv = pv.at[3, 0:H].set(p["ln2g"][0])
    pv = pv.at[3, H:2 * H].set(p["ln2b"][0])
    pv = pv.at[3, 2 * H:3 * H].set(p["wattn"][:, 0])
    pv = pv.at[4, 0:L].set(p["bfc"][0])
    pv = pv.at[4, H:2 * H].set(p["battn"][0, 0])       # broadcast scalar bias

    return {
        "emb_table": p["emb_table"],
        "pos_table": p["pos_table"],
        "w_slab": w_slab,
        "w2": p["w2"].astype(bf16),                    # (F, H)
        "pvec": pv,
    }


def roberta_attention_forward(pp, input_ids, attention_mask):
    # glue: deterministic embedding lookup (stand-in for RoBERTa embeddings)
    emb = pp["emb_table"][input_ids] + pp["pos_table"][None, :, :]     # (B,S,H)
    emb = emb.astype(jnp.float32).reshape(B * S, H)                    # one slab
    mask = attention_mask.astype(jnp.float32)                          # (B,S)

    args = (emb, mask, pp["w_slab"], pp["w2"], pp["pvec"])
    vmem = pl.BlockSpec(memory_space=pltpu.MemorySpace.VMEM)
    logits_padded = pl.pallas_call(
        roberta_attention_kernel,
        out_shape=jax.ShapeDtypeStruct((B, LPAD), jnp.float32),
        in_specs=[vmem] * len(args),
        out_specs=vmem,
    )(*args)
    return logits_padded[:, :L]


if __name__ == "__main__":
    key = jax.random.PRNGKey(0)
    pkey, ikey = jax.random.split(key)
    params = init_params(pkey)
    packed = pack_params(params)

    input_ids = jax.random.randint(ikey, (B, S), minval=0, maxval=V, dtype=jnp.int32)
    attention_mask = jnp.array([[1] * S, [1] * (S - 2) + [0] * 2], dtype=jnp.int32)

    logits = jax.jit(roberta_attention_forward)(packed, input_ids, attention_mask)
    logits = jax.block_until_ready(logits)

    assert logits.shape == (B, L)
    assert bool(jnp.all(jnp.isfinite(logits)))
    print("KERNEL_OK")
</pallas_src>

<mosaic_0001>
module attributes {stable_mosaic.version = 11 : i64} {
  func.func @roberta_attention_kernel(%arg0: memref<16x128xf32, #tpu.memory_space<vmem>>, %arg1: memref<2x8xf32, #tpu.memory_space<vmem>>, %arg2: memref<128x896xbf16, #tpu.memory_space<vmem>>, %arg3: memref<256x128xbf16, #tpu.memory_space<vmem>>, %arg4: memref<8x384xf32, #tpu.memory_space<vmem>>, %arg5: memref<2x128xf32, #tpu.memory_space<vmem>>) attributes {dimension_semantics = [], scalar_prefetch = 0 : i64, scratch_operands = 0 : i64, tpu.core_type = #tpu.core_type<tc>} {
    %c0 = arith.constant 0 : index
    %c0_0 = arith.constant 0 : index
    %0 = vector.load %arg0[%c0, %c0_0] : memref<16x128xf32, #tpu.memory_space<vmem>>, vector<16x128xf32>
    %c0_1 = arith.constant 0 : index
    %c0_2 = arith.constant 0 : index
    %1 = vector.load %arg4[%c0_1, %c0_2] : memref<8x384xf32, #tpu.memory_space<vmem>>, vector<8x384xf32>
    %2 = vector.extract_strided_slice %1 {offsets = [0, 0], sizes = [1, 384], strides = [1, 1]} : vector<8x384xf32> to vector<1x384xf32>
    %3 = vector.extract_strided_slice %1 {offsets = [1, 0], sizes = [1, 128], strides = [1, 1]} : vector<8x384xf32> to vector<1x128xf32>
    %4 = vector.extract_strided_slice %1 {offsets = [1, 128], sizes = [1, 128], strides = [1, 1]} : vector<8x384xf32> to vector<1x128xf32>
    %5 = vector.extract_strided_slice %1 {offsets = [1, 256], sizes = [1, 128], strides = [1, 1]} : vector<8x384xf32> to vector<1x128xf32>
    %6 = vector.extract_strided_slice %1 {offsets = [2, 0], sizes = [1, 256], strides = [1, 1]} : vector<8x384xf32> to vector<1x256xf32>
    %7 = vector.extract_strided_slice %1 {offsets = [2, 256], sizes = [1, 128], strides = [1, 1]} : vector<8x384xf32> to vector<1x128xf32>
    %8 = vector.extract_strided_slice %1 {offsets = [3, 0], sizes = [1, 128], strides = [1, 1]} : vector<8x384xf32> to vector<1x128xf32>
    %9 = vector.extract_strided_slice %1 {offsets = [3, 128], sizes = [1, 128], strides = [1, 1]} : vector<8x384xf32> to vector<1x128xf32>
    %10 = vector.extract_strided_slice %1 {offsets = [3, 256], sizes = [1, 128], strides = [1, 1]} : vector<8x384xf32> to vector<1x128xf32>
    %11 = vector.shape_cast %10 : vector<1x128xf32> to vector<1x1x128xf32>
    %12 = vector.extract_strided_slice %1 {offsets = [4, 0], sizes = [1, 128], strides = [1, 1]} : vector<8x384xf32> to vector<1x128xf32>
    %13 = vector.extract_strided_slice %1 {offsets = [4, 128], sizes = [1, 1], strides = [1, 1]} : vector<8x384xf32> to vector<1x1xf32>
    %14 = arith.truncf %0 : vector<16x128xf32> to vector<16x128xbf16>
    %c0_3 = arith.constant 0 : index
    %c0_4 = arith.constant 0 : index
    %15 = vector.load %arg2[%c0_3, %c0_4] : memref<128x896xbf16, #tpu.memory_space<vmem>>, vector<128x384xbf16>
    %cst = arith.constant dense<0.000000e+00> : vector<16x384xf32>
    %16 = tpu.matmul %14, %15, %cst {dimension_numbers = #tpu.dot_dimension_numbers<[1], [0], [0], [1], [0, 0, 1, 1], [], []>} : vector<16x128xbf16>, vector<128x384xbf16>, vector<16x384xf32> -> vector<16x384xf32>
    %17 = vector.broadcast %2 : vector<1x384xf32> to vector<16x384xf32>
    %18 = arith.addf %16, %17 : vector<16x384xf32>
    %19 = vector.extract_strided_slice %18 {offsets = [0, 0], sizes = [16, 128], strides = [1, 1]} : vector<16x384xf32> to vector<16x128xf32>
    %20 = vector.shape_cast %19 : vector<16x128xf32> to vector<2x8x128xf32>
    %21 = arith.truncf %20 : vector<2x8x128xf32> to vector<2x8x128xbf16>
    %22 = vector.extract_strided_slice %18 {offsets = [0, 128], sizes = [16, 128], strides = [1, 1]} : vector<16x384xf32> to vector<16x128xf32>
    %23 = vector.shape_cast %22 : vector<16x128xf32> to vector<2x8x128xf32>
    %24 = arith.truncf %23 : vector<2x8x128xf32> to vector<2x8x128xbf16>
    %25 = vector.extract_strided_slice %18 {offsets = [0, 256], sizes = [16, 128], strides = [1, 1]} : vector<16x384xf32> to vector<16x128xf32>
    %26 = vector.shape_cast %25 : vector<16x128xf32> to vector<2x8x128xf32>
    %27 = arith.truncf %26 : vector<2x8x128xf32> to vector<2x8x128xbf16>
    "tpu.trace_start"() <{level = 10 : i32, message = "bqd,bkd->bqk"}> : () -> ()
    %cst_5 = arith.constant dense<0.000000e+00> : vector<2x8x8xf32>
    %28 = tpu.matmul %21, %24, %cst_5 {dimension_numbers = #tpu.dot_dimension_numbers<[2], [2], [1], [1], [0, 0, 0, 1, 1, 1], [0], [0]>} : vector<2x8x128xbf16>, vector<2x8x128xbf16>, vector<2x8x8xf32> -> vector<2x8x8xf32>
    "tpu.trace_stop"() : () -> ()
    %cst_6 = arith.constant 0.0883883461 : f32
    %29 = vector.broadcast %cst_6 : f32 to vector<2x8x8xf32>
    %30 = arith.mulf %28, %29 : vector<2x8x8xf32>
    %c0_7 = arith.constant 0 : index
    %c0_8 = arith.constant 0 : index
    %31 = vector.load %arg1[%c0_7, %c0_8] : memref<2x8xf32, #tpu.memory_space<vmem>>, vector<2x8xf32>
    %32 = vector.shape_cast %31 : vector<2x8xf32> to vector<2x1x8xf32>
    %cst_9 = arith.constant 1.000000e+00 : f32
    %33 = vector.broadcast %cst_9 : f32 to vector<2x1x8xf32>
    %34 = arith.subf %32, %33 : vector<2x1x8xf32>
    %cst_10 = arith.constant 1.000000e+09 : f32
    %35 = vector.broadcast %cst_10 : f32 to vector<2x1x8xf32>
    %36 = arith.mulf %34, %35 : vector<2x1x8xf32>
    %37 = vector.broadcast %36 : vector<2x1x8xf32> to vector<2x8x8xf32>
    %38 = arith.addf %30, %37 : vector<2x8x8xf32>
    %cst_11 = arith.constant dense<0xFF800000> : vector<2x8xf32>
    %39 = vector.multi_reduction <maximumf>, %38, %cst_11 [2] : vector<2x8x8xf32> to vector<2x8xf32>
    %40 = vector.shape_cast %39 : vector<2x8xf32> to vector<2x8x1xf32>
    %41 = vector.broadcast %40 : vector<2x8x1xf32> to vector<2x8x8xf32>
    %42 = arith.subf %38, %41 : vector<2x8x8xf32>
    %43 = math.exp %42 : vector<2x8x8xf32>
    %cst_12 = arith.constant dense<0.000000e+00> : vector<2x8xf32>
    %44 = vector.multi_reduction <add>, %43, %cst_12 [2] : vector<2x8x8xf32> to vector<2x8xf32>
    %45 = vector.shape_cast %44 : vector<2x8xf32> to vector<2x8x1xf32>
    %46 = tpu.reciprocal %45 {approx = true} : vector<2x8x1xf32> -> vector<2x8x1xf32>
    %47 = vector.broadcast %46 : vector<2x8x1xf32> to vector<2x8x8xf32>
    %48 = arith.mulf %43, %47 : vector<2x8x8xf32>
    %49 = arith.truncf %48 : vector<2x8x8xf32> to vector<2x8x8xbf16>
    "tpu.trace_start"() <{level = 10 : i32, message = "bqk,bkd->bqd"}> : () -> ()
    %cst_13 = arith.constant dense<0.000000e+00> : vector<2x8x128xf32>
    %50 = tpu.matmul %49, %27, %cst_13 {dimension_numbers = #tpu.dot_dimension_numbers<[2], [1], [1], [2], [0, 0, 0, 1, 1, 2], [0], [0]>} : vector<2x8x8xbf16>, vector<2x8x128xbf16>, vector<2x8x128xf32> -> vector<2x8x128xf32>
    "tpu.trace_stop"() : () -> ()
    %51 = vector.shape_cast %50 : vector<2x8x128xf32> to vector<16x128xf32>
    %52 = arith.truncf %51 : vector<16x128xf32> to vector<16x128xbf16>
    %c0_14 = arith.constant 0 : index
    %c384 = arith.constant 384 : index
    %53 = vector.load %arg2[%c0_14, %c384] : memref<128x896xbf16, #tpu.memory_space<vmem>>, vector<128x128xbf16>
    %cst_15 = arith.constant dense<0.000000e+00> : vector<16x128xf32>
    %54 = tpu.matmul %52, %53, %cst_15 {dimension_numbers = #tpu.dot_dimension_numbers<[1], [0], [0], [1], [0, 0, 1, 1], [], []>} : vector<16x128xbf16>, vector<128x128xbf16>, vector<16x128xf32> -> vector<16x128xf32>
    %55 = vector.broadcast %3 : vector<1x128xf32> to vector<16x128xf32>
    %56 = arith.addf %54, %55 : vector<16x128xf32>
    %57 = arith.addf %0, %56 : vector<16x128xf32>
    %cst_16 = arith.constant dense<0.000000e+00> : vector<16xf32>
    %58 = vector.multi_reduction <add>, %57, %cst_16 [1] : vector<16x128xf32> to vector<16xf32>
    %59 = vector.shape_cast %58 : vector<16xf32> to vector<16x1xf32>
    %cst_17 = arith.constant 1.280000e+02 : f32
    %60 = vector.broadcast %cst_17 : f32 to vector<16x1xf32>
    %61 = arith.divf %59, %60 : vector<16x1xf32>
    %62 = vector.broadcast %61 : vector<16x1xf32> to vector<16x128xf32>
    %63 = arith.subf %57, %62 : vector<16x128xf32>
    %64 = arith.mulf %63, %63 : vector<16x128xf32>
    %cst_18 = arith.constant dense<0.000000e+00> : vector<16xf32>
    %65 = vector.multi_reduction <add>, %64, %cst_18 [1] : vector<16x128xf32> to vector<16xf32>
    %66 = vector.shape_cast %65 : vector<16xf32> to vector<16x1xf32>
    %cst_19 = arith.constant 1.280000e+02 : f32
    %67 = vector.broadcast %cst_19 : f32 to vector<16x1xf32>
    %68 = arith.divf %66, %67 : vector<16x1xf32>
    %69 = vector.broadcast %61 : vector<16x1xf32> to vector<16x128xf32>
    %70 = arith.subf %57, %69 : vector<16x128xf32>
    %cst_20 = arith.constant 9.99999974E-6 : f32
    %71 = vector.broadcast %cst_20 : f32 to vector<16x1xf32>
    %72 = arith.addf %68, %71 : vector<16x1xf32>
    %73 = math.rsqrt %72 : vector<16x1xf32>
    %74 = vector.broadcast %73 : vector<16x1xf32> to vector<16x128xf32>
    %75 = arith.mulf %70, %74 : vector<16x128xf32>
    %76 = vector.broadcast %4 : vector<1x128xf32> to vector<16x128xf32>
    %77 = arith.mulf %75, %76 : vector<16x128xf32>
    %78 = vector.broadcast %5 : vector<1x128xf32> to vector<16x128xf32>
    %79 = arith.addf %77, %78 : vector<16x128xf32>
    %80 = arith.truncf %79 : vector<16x128xf32> to vector<16x128xbf16>
    %c0_21 = arith.constant 0 : index
    %c512 = arith.constant 512 : index
    %81 = vector.load %arg2[%c0_21, %c512] : memref<128x896xbf16, #tpu.memory_space<vmem>>, vector<128x256xbf16>
    %cst_22 = arith.constant dense<0.000000e+00> : vector<16x256xf32>
    %82 = tpu.matmul %80, %81, %cst_22 {dimension_numbers = #tpu.dot_dimension_numbers<[1], [0], [0], [1], [0, 0, 1, 1], [], []>} : vector<16x128xbf16>, vector<128x256xbf16>, vector<16x256xf32> -> vector<16x256xf32>
    %83 = vector.broadcast %6 : vector<1x256xf32> to vector<16x256xf32>
    %84 = arith.addf %82, %83 : vector<16x256xf32>
    %85 = arith.mulf %84, %84 : vector<16x256xf32>
    %86 = arith.mulf %84, %85 : vector<16x256xf32>
    %cst_23 = arith.constant 4.471500e-02 : f32
    %87 = vector.broadcast %cst_23 : f32 to vector<16x256xf32>
    %88 = arith.mulf %87, %86 : vector<16x256xf32>
    %89 = arith.addf %84, %88 : vector<16x256xf32>
    %cst_24 = arith.constant 0.797884583 : f32
    %90 = vector.broadcast %cst_24 : f32 to vector<16x256xf32>
    %91 = arith.mulf %90, %89 : vector<16x256xf32>
    %92 = math.tanh %91 : vector<16x256xf32>
    %cst_25 = arith.constant 1.000000e+00 : f32
    %93 = vector.broadcast %cst_25 : f32 to vector<16x256xf32>
    %94 = arith.addf %93, %92 : vector<16x256xf32>
    %cst_26 = arith.constant 5.000000e-01 : f32
    %95 = vector.broadcast %cst_26 : f32 to vector<16x256xf32>
    %96 = arith.mulf %95, %94 : vector<16x256xf32>
    %97 = arith.mulf %84, %96 : vector<16x256xf32>
    %98 = arith.truncf %97 : vector<16x256xf32> to vector<16x256xbf16>
    %c0_27 = arith.constant 0 : index
    %c0_28 = arith.constant 0 : index
    %99 = vector.load %arg3[%c0_27, %c0_28] : memref<256x128xbf16, #tpu.memory_space<vmem>>, vector<256x128xbf16>
    %cst_29 = arith.constant dense<0.000000e+00> : vector<16x128xf32>
    %100 = tpu.matmul %98, %99, %cst_29 {dimension_numbers = #tpu.dot_dimension_numbers<[1], [0], [0], [1], [0, 0, 1, 1], [], []>} : vector<16x256xbf16>, vector<256x128xbf16>, vector<16x128xf32> -> vector<16x128xf32>
    %101 = vector.broadcast %7 : vector<1x128xf32> to vector<16x128xf32>
    %102 = arith.addf %100, %101 : vector<16x128xf32>
    %103 = arith.addf %79, %102 : vector<16x128xf32>
    %cst_30 = arith.constant dense<0.000000e+00> : vector<16xf32>
    %104 = vector.multi_reduction <add>, %103, %cst_30 [1] : vector<16x128xf32> to vector<16xf32>
    %105 = vector.shape_cast %104 : vector<16xf32> to vector<16x1xf32>
    %cst_31 = arith.constant 1.280000e+02 : f32
    %106 = vector.broadcast %cst_31 : f32 to vector<16x1xf32>
    %107 = arith.divf %105, %106 : vector<16x1xf32>
    %108 = vector.broadcast %107 : vector<16x1xf32> to vector<16x128xf32>
    %109 = arith.subf %103, %108 : vector<16x128xf32>
    %110 = arith.mulf %109, %109 : vector<16x128xf32>
    %cst_32 = arith.constant dense<0.000000e+00> : vector<16xf32>
    %111 = vector.multi_reduction <add>, %110, %cst_32 [1] : vector<16x128xf32> to vector<16xf32>
    %112 = vector.shape_cast %111 : vector<16xf32> to vector<16x1xf32>
    %cst_33 = arith.constant 1.280000e+02 : f32
    %113 = vector.broadcast %cst_33 : f32 to vector<16x1xf32>
    %114 = arith.divf %112, %113 : vector<16x1xf32>
    %115 = vector.broadcast %107 : vector<16x1xf32> to vector<16x128xf32>
    %116 = arith.subf %103, %115 : vector<16x128xf32>
    %cst_34 = arith.constant 9.99999974E-6 : f32
    %117 = vector.broadcast %cst_34 : f32 to vector<16x1xf32>
    %118 = arith.addf %114, %117 : vector<16x1xf32>
    %119 = math.rsqrt %118 : vector<16x1xf32>
    %120 = vector.broadcast %119 : vector<16x1xf32> to vector<16x128xf32>
    %121 = arith.mulf %116, %120 : vector<16x128xf32>
    %122 = vector.broadcast %8 : vector<1x128xf32> to vector<16x128xf32>
    %123 = arith.mulf %121, %122 : vector<16x128xf32>
    %124 = vector.broadcast %9 : vector<1x128xf32> to vector<16x128xf32>
    %125 = arith.addf %123, %124 : vector<16x128xf32>
    %126 = vector.shape_cast %125 : vector<16x128xf32> to vector<2x8x128xf32>
    %127 = vector.broadcast %11 : vector<1x1x128xf32> to vector<2x8x128xf32>
    %128 = arith.mulf %126, %127 : vector<2x8x128xf32>
    %cst_35 = arith.constant dense<0.000000e+00> : vector<2x8xf32>
    %129 = vector.multi_reduction <add>, %128, %cst_35 [2] : vector<2x8x128xf32> to vector<2x8xf32>
    %130 = vector.broadcast %13 : vector<1x1xf32> to vector<2x8xf32>
    %131 = arith.addf %129, %130 : vector<2x8xf32>
    %cst_36 = arith.constant dense<0xFF800000> : vector<2xf32>
    %132 = vector.multi_reduction <maximumf>, %131, %cst_36 [1] : vector<2x8xf32> to vector<2xf32>
    %133 = vector.shape_cast %132 : vector<2xf32> to vector<2x1xf32>
    %134 = vector.broadcast %133 : vector<2x1xf32> to vector<2x8xf32>
    %135 = arith.subf %131, %134 : vector<2x8xf32>
    %136 = math.exp %135 : vector<2x8xf32>
    %cst_37 = arith.constant dense<0.000000e+00> : vector<2xf32>
    %137 = vector.multi_reduction <add>, %136, %cst_37 [1] : vector<2x8xf32> to vector<2xf32>
    %138 = vector.shape_cast %137 : vector<2xf32> to vector<2x1xf32>
    %139 = tpu.reciprocal %138 {approx = true} : vector<2x1xf32> -> vector<2x1xf32>
    %140 = vector.broadcast %139 : vector<2x1xf32> to vector<2x8xf32>
    %141 = arith.mulf %136, %140 : vector<2x8xf32>
    %142 = vector.shape_cast %141 : vector<2x8xf32> to vector<2x8x1xf32>
    %143 = vector.broadcast %142 : vector<2x8x1xf32> to vector<2x8x128xf32>
    %144 = arith.mulf %143, %126 : vector<2x8x128xf32>
    %cst_38 = arith.constant dense<0.000000e+00> : vector<2x128xf32>
    %145 = vector.multi_reduction <add>, %144, %cst_38 [1] : vector<2x8x128xf32> to vector<2x128xf32>
    %146 = arith.truncf %145 : vector<2x128xf32> to vector<2x128xbf16>
    %c0_39 = arith.constant 0 : index
    %c768 = arith.constant 768 : index
    %147 = vector.load %arg2[%c0_39, %c768] : memref<128x896xbf16, #tpu.memory_space<vmem>>, vector<128x128xbf16>
    %cst_40 = arith.constant dense<0.000000e+00> : vector<2x128xf32>
    %148 = tpu.matmul %146, %147, %cst_40 {dimension_numbers = #tpu.dot_dimension_numbers<[1], [0], [0], [1], [0, 0, 1, 1], [], []>} : vector<2x128xbf16>, vector<128x128xbf16>, vector<2x128xf32> -> vector<2x128xf32>
    %149 = vector.broadcast %12 : vector<1x128xf32> to vector<2x128xf32>
    %150 = arith.addf %148, %149 : vector<2x128xf32>
    %c0_41 = arith.constant 0 : index
    %c0_42 = arith.constant 0 : index
    %151 = vector.load %arg5[%c0_41, %c0_42] : memref<2x128xf32, #tpu.memory_space<vmem>>, vector<2x128xf32>
    tpu.vector_store %arg5[%c0_41, %c0_42], %150 {strides = array<i32>} : memref<2x128xf32, #tpu.memory_space<vmem>>, vector<2x128xf32>,
    return
  }
}

</mosaic_0001>

<llo_original>
// kernel: roberta_attention_forward.1
$region0: #{roberta_attention_forward.1}
  #allocation0 [shape = 'u32[]', space=smem, size = 0x4, offset = 0x4, fixed_abs, tag = 'smem constant byte address 0x4 - core index']
  #allocation1 [shape = 'u32[72,128]{1,0:T(1,128)}', space=vmem, size = 0x9000, scoped, tag = 'internal scratch']
  %s0 = inlined_call_operand.vmem [shape: f32[16,128], index: 0, kind: input, shape index: {}]
  %s1 = inlined_call_operand.vmem [shape: f32[2,8], index: 1, kind: input, shape index: {}]
  %s2 = inlined_call_operand.hbm [shape: bf16[128,896], index: 2, kind: input, shape index: {}]
  %s3 = inlined_call_operand.vmem [shape: bf16[256,128], index: 3, kind: input, shape index: {}]
  %s4 = inlined_call_operand.vmem [shape: f32[8,384], index: 4, kind: input, shape index: {}]
  %s5 = inlined_call_operand.hbm [shape: f32[2,128], index: 5, kind: output, shape index: {}]
  %s6 = sld [smem:[#allocation0]]
  $region34: #{roberta_attention_forward.1} parent=0
    _
  %s8 = ssub.s32 1, %s6
  %s9 = scalar_select 0, %s8, %s6
  $region1: #{roberta_attention_forward.1} parent=0
    #allocation2 [shape = 'u8[229376]{0}', space=vmem, size = 0x38000, scoped, tag = 'input window, operand 2, single buffered']
    #allocation3 [shape = 's32[1]{0}', space=sflag, size = 0x4, scoped, tag = 'scoped memory for roberta_attention_forward.1']
    #allocation4 [shape = 's32[1]{0}', space=sflag, size = 0x4, scoped, tag = 'scoped memory for roberta_attention_forward.1']
    #allocation5 [shape = 'u8[1024]{0}', space=vmem, size = 0x400, scoped, tag = 'output window, operand 0, single buffered']
    %10 = vsyncpa [#allocation3], 0
    %11 = vsyncpa [#allocation4], 0
    // Predicated region
    $region2: #{roberta_attention_forward.1} parent=1 // pred_check
      _
    $region3: #{roberta_attention_forward.1} parent=1 // pred_check_branch
      %13 = sbr.rel (0) target = $region5
    $region4: #{roberta_attention_forward.1} parent=1 // pred_region
      _
    $region5: #{roberta_attention_forward.1} parent=1 // pred_fallthru
      _
    // Predicated region
    $region6: #{roberta_attention_forward.1} parent=1 // pred_check
      _
    $region7: #{roberta_attention_forward.1} parent=1 // pred_check_branch
      %15 = sbr.rel (0) target = $region9
    $region8: #{roberta_attention_forward.1} parent=1 // pred_region
      _
    $region9: #{roberta_attention_forward.1} parent=1 // pred_fallthru
      _
    // Predicated region
    $region10: #{roberta_attention_forward.1} parent=1 // pred_check
      _
    $region11: #{roberta_attention_forward.1} parent=1 // pred_check_branch
      %17 = sbr.rel (0) target = $region13
    $region12: #{roberta_attention_forward.1} parent=1 // pred_region
      %19 = vsyncadd [#allocation3], 0
      %s20 = sshll.u32 %s2, 4
      %s21 = int_to_ptr.hbm [resolvable:$true] %s20
      %s22 = sshll.u32 [#allocation2], 4
      %s23 = int_to_ptr.vmem [resolvable:$true] %s22
      %28 = dma.hbm_to_vmem [thread:$0]  %s21, 7168, %s23, [#allocation3], 448, 448, 28
    $region13: #{roberta_attention_forward.1} parent=1 // pred_fallthru
      _
    // Predicated region
    $region14: #{roberta_attention_forward.1} parent=1 // pred_check
      _
    $region15: #{roberta_attention_forward.1} parent=1 // pred_check_branch
      %30 = sbr.rel (0) target = $region17
    $region16: #{roberta_attention_forward.1} parent=1 // pred_region
      _
    $region17: #{roberta_attention_forward.1} parent=1 // pred_fallthru
      _
    // Predicated region
    $region18: #{roberta_attention_forward.1} parent=1 // pred_check
      _
    $region19: #{roberta_attention_forward.1} parent=1 // pred_check_branch
      %32 = sbr.rel (0) target = $region21
    $region20: #{roberta_attention_forward.1} parent=1 // pred_region
      _
    $region21: #{roberta_attention_forward.1} parent=1 // pred_fallthru
      _
    // Predicated region
    $region22: #{roberta_attention_forward.1} parent=1 // pred_check
      _
    $region23: #{roberta_attention_forward.1} parent=1 // pred_check_branch
      %34 = sbr.rel (0) target = $region25
    $region24: #{roberta_attention_forward.1} parent=1 // pred_region
      %36 = dma.done [#allocation3], 7168
    $region25: #{roberta_attention_forward.1} parent=1 // pred_fallthru
      _
    %v38 = vld [vmem:[%s0] sm:$0xff]
    %v39 = vld [vmem:[%s0 + $0x8] sm:$0xff]
    %v40 = vld [vmem:[%s4] sm:$0xff]
    %v41 = vld [vmem:[%s4 + $0x8] sm:$0xff]
    %v42 = vld [vmem:[%s4 + $0x10] sm:$0xff]
    %v43 = vpack.c.bf16 %v39, %v38
    %v44 = vld [vmem:[#allocation2] sm:$0xff]
    %v45 = vld [vmem:[#allocation2 + $0x8] sm:$0xf]
    %v46 = vld [vmem:[#allocation2 + $0x1c] sm:$0xff]
    %v47 = vld [vmem:[#allocation2 + $0x24] sm:$0xf]
    %v48 = vld [vmem:[#allocation2 + $0x38] sm:$0xff]
    %v49 = vld [vmem:[#allocation2 + $0x40] sm:$0xf]
    %v50 = vld [vmem:[#allocation2 + $0x54] sm:$0xff]
    %v51 = vld [vmem:[#allocation2 + $0x5c] sm:$0xf]
    %v52 = vld [vmem:[#allocation2 + $0x70] sm:$0xff]
    %v53 = vld [vmem:[#allocation2 + $0x78] sm:$0xf]
    %v54 = vld [vmem:[#allocation2 + $0x8c] sm:$0xff]
    %v55 = vld [vmem:[#allocation2 + $0x94] sm:$0xf]
    %v56 = vld [vmem:[#allocation2 + $0xa8] sm:$0xff]
    %v57 = vld [vmem:[#allocation2 + $0xb0] sm:$0xf]
    %v58 = vld [vmem:[#allocation2 + $0xc4] sm:$0xff]
    %v59 = vld [vmem:[#allocation2 + $0xcc] sm:$0xf]
    %v60 = vld [vmem:[#allocation2 + $0xe0] sm:$0xff]
    %v61 = vld [vmem:[#allocation2 + $0xe8] sm:$0xf]
    %v62 = vld [vmem:[#allocation2 + $0xfc] sm:$0xff]
    %v63 = vld [vmem:[#allocation2 + $0x104] sm:$0xf]
    %v64 = vld [vmem:[#allocation2 + $0x118] sm:$0xff]
    %v65 = vld [vmem:[#allocation2 + $0x120] sm:$0xf]
    %v66 = vld [vmem:[#allocation2 + $0x134] sm:$0xff]
    %v67 = vld [vmem:[#allocation2 + $0x13c] sm:$0xf]
    %v68 = vld [vmem:[#allocation2 + $0x150] sm:$0xff]
    %v69 = vld [vmem:[#allocation2 + $0x158] sm:$0xf]
    %v70 = vld [vmem:[#allocation2 + $0x16c] sm:$0xff]
    %v71 = vld [vmem:[#allocation2 + $0x174] sm:$0xf]
    %v72 = vld [vmem:[#allocation2 + $0x188] sm:$0xff]
    %v73 = vld [vmem:[#allocation2 + $0x190] sm:$0xf]
    %v74 = vld [vmem:[#allocation2 + $0x1a4] sm:$0xff]
    %v75 = vld [vmem:[#allocation2 + $0x1ac] sm:$0xf]
    %v76 = vperm.slane %v40, 0
    %v77 = vperm.slane %v41, 0
    %v78 = vperm.slane %v42, 0
    %v111 = vunpack.c.l.b16 %v44
    %v112 = vunpack.c.h.b16 %v44
    %v113 = vunpack.c.l.b16 %v45
    %v114 = vunpack.c.l.b16 %v46
    %v115 = vunpack.c.h.b16 %v46
    %v116 = vunpack.c.l.b16 %v47
    %v117 = vunpack.c.l.b16 %v48
    %v118 = vunpack.c.h.b16 %v48
    %v119 = vunpack.c.l.b16 %v49
    %v120 = vunpack.c.l.b16 %v50
    %v121 = vunpack.c.h.b16 %v50
    %v122 = vunpack.c.l.b16 %v51
    %v123 = vunpack.c.l.b16 %v52
    %v124 = vunpack.c.h.b16 %v52
    %v125 = vunpack.c.l.b16 %v53
    %v126 = vunpack.c.l.b16 %v54
    %v127 = vunpack.c.h.b16 %v54
    %v128 = vunpack.c.l.b16 %v55
    %v129 = vunpack.c.l.b16 %v56
    %v130 = vunpack.c.h.b16 %v56
    %v131 = vunpack.c.l.b16 %v57
    %v132 = vunpack.c.l.b16 %v58
    %v133 = vunpack.c.h.b16 %v58
    %v134 = vunpack.c.l.b16 %v59
    %v135 = vunpack.c.l.b16 %v60
    %v136 = vunpack.c.h.b16 %v60
    %v137 = vunpack.c.l.b16 %v61
    %v138 = vunpack.c.l.b16 %v62
    %v139 = vunpack.c.h.b16 %v62
    %v140 = vunpack.c.l.b16 %v63
    %v141 = vunpack.c.l.b16 %v64
    %v142 = vunpack.c.h.b16 %v64
    %v143 = vunpack.c.l.b16 %v65
    %v144 = vunpack.c.l.b16 %v66
    %v145 = vunpack.c.h.b16 %v66
    %v146 = vunpack.c.l.b16 %v67
    %v147 = vunpack.c.l.b16 %v68
    %v148 = vunpack.c.h.b16 %v68
    %v149 = vunpack.c.l.b16 %v69
    %v150 = vunpack.c.l.b16 %v70
    %v151 = vunpack.c.h.b16 %v70
    %v152 = vunpack.c.l.b16 %v71
    %v153 = vunpack.c.l.b16 %v72
    %v154 = vunpack.c.h.b16 %v72
    %v155 = vunpack.c.l.b16 %v73
    %v156 = vunpack.c.l.b16 %v74
    %v157 = vunpack.c.h.b16 %v74
    %v158 = vunpack.c.l.b16 %v75
    %v159 = vpack.c.b16 %v114, %v111
    %v160 = vpack.c.b16 %v115, %v112
    %v161 = vpack.c.b16 %v116, %v113
    %v162 = vpack.c.b16 %v120, %v117
    %v163 = vpack.c.b16 %v121, %v118
    %v164 = vpack.c.b16 %v122, %v119
    %v165 = vpack.c.b16 %v126, %v123
    %v166 = vpack.c.b16 %v127, %v124
    %v167 = vpack.c.b16 %v128, %v125
    %v168 = vpack.c.b16 %v132, %v129
    %v169 = vpack.c.b16 %v133, %v130
    %v170 = vpack.c.b16 %v134, %v131
    %v171 = vpack.c.b16 %v138, %v135
    %v172 = vpack.c.b16 %v139, %v136
    %v173 = vpack.c.b16 %v140, %v137
    %v174 = vpack.c.b16 %v144, %v141
    %v175 = vpack.c.b16 %v145, %v142
    %v176 = vpack.c.b16 %v146, %v143
    %v177 = vpack.c.b16 %v150, %v147
    %v178 = vpack.c.b16 %v151, %v148
    %v179 = vpack.c.b16 %v152, %v149
    %v180 = vpack.c.b16 %v156, %v153
    %v181 = vpack.c.b16 %v157, %v154
    %v182 = vpack.c.b16 %v158, %v155
    %207 = vmatpush.bf16.msra.mxu0 %v180
    %208 = vmatpush.bf16.msra.mxu0 %v177
    %209 = vmatpush.bf16.msra.mxu0 %v174
    %210 = vmatpush.bf16.msra.mxu0 %v171
    %211 = vmatpush.bf16.msra.mxu0 %v168
    %212 = vmatpush.bf16.msra.mxu0 %v165
    %213 = vmatpush.bf16.msra.mxu0 %v162
    %214 = vmatpush.bf16.msra.mxu0 %v159
    %215 = vmatmul.bf16.gmra.mxu0 %v43
    %v216 = vpop.f32.mrf.mxu0
    %v217 = vadd.f32 %v76, %v216
    %v218 = vpop.f32.mrf.mxu0
    %v219 = vadd.f32 %v76, %v218
    %220 = vdwg.mxu0
    %221 = vmatpush.bf16.msra.mxu0 %v181
    %222 = vmatpush.bf16.msra.mxu0 %v178
    %223 = vmatpush.bf16.msra.mxu0 %v175
    %224 = vmatpush.bf16.msra.mxu0 %v172
    %225 = vmatpush.bf16.msra.mxu0 %v169
    %226 = vmatpush.bf16.msra.mxu0 %v166
    %227 = vmatpush.bf16.msra.mxu0 %v163
    %228 = vmatpush.bf16.msra.mxu0 %v160
    %229 = vmatmul.bf16.gmra.mxu0 %v43
    %v230 = vpop.f32.mrf.mxu0
    %v231 = vadd.f32 %v77, %v230
    %v232 = vpop.f32.mrf.mxu0
    %v233 = vadd.f32 %v77, %v232
    %234 = vdwg.mxu0
    %235 = vmatpush.bf16.msra.mxu0 %v182
    %236 = vmatpush.bf16.msra.mxu0 %v179
    %237 = vmatpush.bf16.msra.mxu0 %v176
    %238 = vmatpush.bf16.msra.mxu0 %v173
    %239 = vmatpush.bf16.msra.mxu0 %v170
    %240 = vmatpush.bf16.msra.mxu0 %v167
    %241 = vmatpush.bf16.msra.mxu0 %v164
    %242 = vmatpush.bf16.msra.mxu0 %v161
    %243 = vmatmul.bf16.gmra.mxu0 %v43
    %v244 = vpop.f32.mrf.mxu0
    %v245 = vadd.f32 %v78, %v244
    %v246 = vpop.f32.mrf.mxu0
    %v247 = vadd.f32 %v78, %v246
    %248 = vdwg.mxu0
    %v249 = vpack.c.bf16 %v217, %v217
    %v250 = vpack.c.bf16 %v219, %v219
    %v251 = vpack.c.bf16 %v231, %v231
    %v252 = vpack.c.bf16 %v233, %v233
    %v253 = vpack.c.bf16 %v245, %v245
    %v254 = vpack.c.bf16 %v247, %v247
    %255 = vmatpush.bf16.xpose.msra.mxu0 0
    %256 = vmatpush.bf16.xpose.msra.mxu0 0
    %257 = vmatpush.bf16.xpose.msra.mxu0 0
    %258 = vmatpush.bf16.xpose.msra.mxu0 0
    %259 = vmatpush.bf16.xpose.msra.mxu0 0
    %260 = vmatpush.bf16.xpose.msra.mxu0 0
    %261 = vmatpush.bf16.xpose.msra.mxu0 0
    %262 = vmatpush.bf16.xpose.msra.mxu0 %v251
    %263 = vmatmul.bf16.gmra.mxu0 %v249
    %v264 = vpop.f32.mrf.mxu0
    %v265 = vadd.f32 0.0, %v264
    %v266 = vpop.f32.mrf.mxu0
    %267 = vdwg.mxu0
    %268 = vmatpush.bf16.xpose.msra.mxu0 0
    %269 = vmatpush.bf16.xpose.msra.mxu0 0
    %270 = vmatpush.bf16.xpose.msra.mxu0 0
    %271 = vmatpush.bf16.xpose.msra.mxu0 0
    %272 = vmatpush.bf16.xpose.msra.mxu0 0
    %273 = vmatpush.bf16.xpose.msra.mxu0 0
    %274 = vmatpush.bf16.xpose.msra.mxu0 0
    %275 = vmatpush.bf16.xpose.msra.mxu0 %v252
    %276 = vmatmul.bf16.gmra.mxu0 %v250
    %v277 = vpop.f32.mrf.mxu0
    %v278 = vadd.f32 0.0, %v277
    %v279 = vpop.f32.mrf.mxu0
    %280 = vdwg.mxu0
    %v281 = vmul.f32 %v265, 0.088388346
    %v282 = vmul.f32 %v278, 0.088388346
    %v283 = vld [vmem:[%s1] sm:$0x3]
    %v285 = vrot.slane %v283, 1
    %v287 = vsub.f32 %v283, 1.0
    %v288 = vsub.f32 %v285, 1.0
    %v289 = vmul.f32 %v287, 1e+09
    %v290 = vmul.f32 %v288, 1e+09
    %v293 = vperm.slane %v289, 0
    %v294 = vperm.slane %v290, 0
    %v297 = vadd.f32 %v281, %v293
    %v298 = vadd.f32 %v282, %v294
    %vm299 = vcmask 64512
    %v300 = vsel %vm299, %v297, -inf
    %301 = vmax.xlane.f32.xlu0 %v300
    %v302 = vpop.xlane.xlu0 %301
    %v303 = vsel %vm299, %v298, -inf
    %304 = vmax.xlane.f32.xlu0 %v303
    %v305 = vpop.xlane.xlu0 %304
    %v306 = vsub.f32 %v297, %v302
    %v307 = vsub.f32 %v298, %v305
    %v308 = vmul.f32 %v306, 1.442695
    %v309 = vpow.pop %v308
    %v310 = vmul.f32 %v307, 1.442695
    %v311 = vpow.pop %v310
    %v312 = vsel %vm299, %v309, 0.0
    %313 = vadd.xlane.f32.xlu0 %v312
    %v314 = vpop.xlane.xlu0 %313
    %v315 = vsel %vm299, %v311, 0.0
    %316 = vadd.xlane.f32.xlu0 %v315
    %v317 = vpop.xlane.xlu0 %316
    %v318 = vrcp.pop %v314
    %v319 = vrcp.pop %v317
    %v320 = vmul.f32 %v309, %v318
    %v321 = vmul.f32 %v311, %v319
    %v322 = vpack.c.bf16 %v320, %v320
    %v323 = vpack.c.bf16 %v321, %v321
    %v325 = vsel %vm299, %v322, 0
    %vm327 = vcmask 1043456
    %v329 = vsel %vm327, %v253, 0
    %331 = vmatpush.bf16.msra.mxu0 0
    %332 = vmatpush.bf16.msra.mxu0 0
    %333 = vmatpush.bf16.msra.mxu0 0
    %334 = vmatpush.bf16.msra.mxu0 0
    %335 = vmatpush.bf16.msra.mxu0 0
    %336 = vmatpush.bf16.msra.mxu0 0
    %337 = vmatpush.bf16.msra.mxu0 0
    %338 = vmatpush.bf16.msra.mxu0 %v329
    %339 = vmatmul.bf16.gmra.mxu0 %v325
    %v340 = vpop.f32.mrf.mxu0
    %v341 = vadd.f32 0.0, %v340
    %v342 = vpop.f32.mrf.mxu0
    %343 = vdwg.mxu0
    %v345 = vsel %vm299, %v323, 0
    %v348 = vsel %vm327, %v254, 0
    %350 = vmatpush.bf16.msra.mxu0 0
    %351 = vmatpush.bf16.msra.mxu0 0
    %352 = vmatpush.bf16.msra.mxu0 0
    %353 = vmatpush.bf16.msra.mxu0 0
    %354 = vmatpush.bf16.msra.mxu0 0
    %355 = vmatpush.bf16.msra.mxu0 0
    %356 = vmatpush.bf16.msra.mxu0 0
    %357 = vmatpush.bf16.msra.mxu0 %v348
    %358 = vmatmul.bf16.gmra.mxu0 %v345
    %v359 = vpop.f32.mrf.mxu0
    %v360 = vadd.f32 0.0, %v359
    %v361 = vpop.f32.mrf.mxu0
    %362 = vdwg.mxu0
    %v363 = vpack.c.bf16 %v360, %v341
    %v364 = vld [vmem:[#allocation2 + $0xc] sm:$0xf]
    %v365 = vld [vmem:[#allocation2 + $0x28] sm:$0xf]
    %v366 = vld [vmem:[#allocation2 + $0x44] sm:$0xf]
    %v367 = vld [vmem:[#allocation2 + $0x60] sm:$0xf]
    %v368 = vld [vmem:[#allocation2 + $0x7c] sm:$0xf]
    %v369 = vld [vmem:[#allocation2 + $0x98] sm:$0xf]
    %v370 = vld [vmem:[#allocation2 + $0xb4] sm:$0xf]
    %v371 = vld [vmem:[#allocation2 + $0xd0] sm:$0xf]
    %v372 = vld [vmem:[#allocation2 + $0xec] sm:$0xf]
    %v373 = vld [vmem:[#allocation2 + $0x108] sm:$0xf]
    %v374 = vld [vmem:[#allocation2 + $0x124] sm:$0xf]
    %v375 = vld [vmem:[#allocation2 + $0x140] sm:$0xf]
    %v376 = vld [vmem:[#allocation2 + $0x15c] sm:$0xf]
    %v377 = vld [vmem:[#allocation2 + $0x178] sm:$0xf]
    %v378 = vld [vmem:[#allocation2 + $0x194] sm:$0xf]
    %v379 = vld [vmem:[#allocation2 + $0x1b0] sm:$0xf]
    %v380 = vperm.slane %v40, 1
    %v397 = vunpack.c.l.b16 %v364
    %v398 = vunpack.c.l.b16 %v365
    %v399 = vunpack.c.l.b16 %v366
    %v400 = vunpack.c.l.b16 %v367
    %v401 = vunpack.c.l.b16 %v368
    %v402 = vunpack.c.l.b16 %v369
    %v403 = vunpack.c.l.b16 %v370
    %v404 = vunpack.c.l.b16 %v371
    %v405 = vunpack.c.l.b16 %v372
    %v406 = vunpack.c.l.b16 %v373
    %v407 = vunpack.c.l.b16 %v374
    %v408 = vunpack.c.l.b16 %v375
    %v409 = vunpack.c.l.b16 %v376
    %v410 = vunpack.c.l.b16 %v377
    %v411 = vunpack.c.l.b16 %v378
    %v412 = vunpack.c.l.b16 %v379
    %v413 = vpack.c.b16 %v398, %v397
    %v414 = vpack.c.b16 %v400, %v399
    %v415 = vpack.c.b16 %v402, %v401
    %v416 = vpack.c.b16 %v404, %v403
    %v417 = vpack.c.b16 %v406, %v405
    %v418 = vpack.c.b16 %v408, %v407
    %v419 = vpack.c.b16 %v410, %v409
    %v420 = vpack.c.b16 %v412, %v411
    %429 = vmatpush.bf16.msra.mxu0 %v420
    %430 = vmatpush.bf16.msra.mxu0 %v419
    %431 = vmatpush.bf16.msra.mxu0 %v418
    %432 = vmatpush.bf16.msra.mxu0 %v417
    %433 = vmatpush.bf16.msra.mxu0 %v416
    %434 = vmatpush.bf16.msra.mxu0 %v415
    %435 = vmatpush.bf16.msra.mxu0 %v414
    %436 = vmatpush.bf16.msra.mxu0 %v413
    %437 = vmatmul.bf16.gmra.mxu0 %v363
    %v438 = vpop.f32.mrf.mxu0
    %v439 = vadd.f32 %v380, %v438
    %v440 = vpop.f32.mrf.mxu0
    %v441 = vadd.f32 %v380, %v440
    %442 = vdwg.mxu0
    %v443 = vadd.f32 %v38, %v439
    %v444 = vadd.f32 %v39, %v441
    %445 = vadd.xlane.f32.xlu0 %v443
    %v446 = vpop.xlane.xlu0 %445
    %447 = vadd.xlane.f32.xlu0 %v444
    %v448 = vpop.xlane.xlu0 %447
    %v449 = vrcp.pop 128.0
    %v450 = vmul.f32 128.0, %v449
    %v451 = vsub.f32 1.0, %v450
    %v452 = vmul.f32 %v449, %v451
    %v453 = vadd.f32 %v449, %v452
    %vm454 = vweird.f32 %v449
    %v455 = vsel %vm454, %v449, %v453
    %v456 = vmul.f32 %v446, %v455
    %v457 = vmul.f32 %v448, %v455
    %v458 = vsub.f32 %v443, %v456
    %v459 = vsub.f32 %v444, %v457
    %v460 = vmul.f32 %v458, %v458
    %v461 = vmul.f32 %v459, %v459
    %462 = vadd.xlane.f32.xlu0 %v460
    %v463 = vpop.xlane.xlu0 %462
    %464 = vadd.xlane.f32.xlu0 %v461
    %v465 = vpop.xlane.xlu0 %464
    %v466 = vmul.f32 %v463, %v455
    %v467 = vmul.f32 %v465, %v455
    %v468 = vadd.f32 %v466, 1e-05
    %v469 = vadd.f32 %v467, 1e-05
    %v470 = vrsqrt.pop %v468
    %v471 = vmul.f32 %v470, %v468
    %v472 = vmul.f32 %v471, %v470
    %v473 = vmul.f32 0.5, %v472
    %v474 = vsub.f32 1.5, %v473
    %v475 = vmul.f32 %v470, %v474
    %vm476 = vweird.f32 %v468
    %vm477 = vweird.f32 %v470
    %vm478 = vmor %vm476, %vm477
    %v479 = vsel %vm478, %v470, %v475
    %v480 = vrsqrt.pop %v469
    %v481 = vmul.f32 %v480, %v469
    %v482 = vmul.f32 %v481, %v480
    %v483 = vmul.f32 0.5, %v482
    %v484 = vsub.f32 1.5, %v483
    %v485 = vmul.f32 %v480, %v484
    %vm486 = vweird.f32 %v469
    %vm487 = vweird.f32 %v480
    %vm488 = vmor %vm486, %vm487
    %v489 = vsel %vm488, %v480, %v485
    %v490 = vmul.f32 %v458, %v479
    %v491 = vmul.f32 %v459, %v489
    %v492 = vperm.slane %v41, 1
    %v493 = vmul.f32 %v490, %v492
    %v494 = vmul.f32 %v491, %v492
    %v495 = vperm.slane %v42, 1
    %v496 = vadd.f32 %v493, %v495
    %v497 = vadd.f32 %v494, %v495
    %v498 = vpack.c.bf16 %v497, %v496
    %v499 = vld [vmem:[#allocation2 + $0x10] sm:$0xff]
    %v500 = vld [vmem:[#allocation2 + $0x2c] sm:$0xff]
    %v501 = vld [vmem:[#allocation2 + $0x48] sm:$0xff]
    %v502 = vld [vmem:[#allocation2 + $0x64] sm:$0xff]
    %v503 = vld [vmem:[#allocation2 + $0x80] sm:$0xff]
    %v504 = vld [vmem:[#allocation2 + $0x9c] sm:$0xff]
    %v505 = vld [vmem:[#allocation2 + $0xb8] sm:$0xff]
    %v506 = vld [vmem:[#allocation2 + $0xd4] sm:$0xff]
    %v507 = vld [vmem:[#allocation2 + $0xf0] sm:$0xff]
    %v508 = vld [vmem:[#allocation2 + $0x10c] sm:$0xff]
    %v509 = vld [vmem:[#allocation2 + $0x128] sm:$0xff]
    %v510 = vld [vmem:[#allocation2 + $0x144] sm:$0xff]
    %v511 = vld [vmem:[#allocation2 + $0x160] sm:$0xff]
    %v512 = vld [vmem:[#allocation2 + $0x17c] sm:$0xff]
    %v513 = vld [vmem:[#allocation2 + $0x198] sm:$0xff]
    %v514 = vld [vmem:[#allocation2 + $0x1b4] sm:$0xff]
    %v515 = vperm.slane %v40, 2
    %v516 = vperm.slane %v41, 2
    %v533 = vunpack.c.l.b16 %v499
    %v534 = vunpack.c.h.b16 %v499
    %v535 = vunpack.c.l.b16 %v500
    %v536 = vunpack.c.h.b16 %v500
    %v537 = vunpack.c.l.b16 %v501
    %v538 = vunpack.c.h.b16 %v501
    %v539 = vunpack.c.l.b16 %v502
    %v540 = vunpack.c.h.b16 %v502
    %v541 = vunpack.c.l.b16 %v503
    %v542 = vunpack.c.h.b16 %v503
    %v543 = vunpack.c.l.b16 %v504
    %v544 = vunpack.c.h.b16 %v504
    %v545 = vunpack.c.l.b16 %v505
    %v546 = vunpack.c.h.b16 %v505
    %v547 = vunpack.c.l.b16 %v506
    %v548 = vunpack.c.h.b16 %v506
    %v549 = vunpack.c.l.b16 %v507
    %v550 = vunpack.c.h.b16 %v507
    %v551 = vunpack.c.l.b16 %v508
    %v552 = vunpack.c.h.b16 %v508
    %v553 = vunpack.c.l.b16 %v509
    %v554 = vunpack.c.h.b16 %v509
    %v555 = vunpack.c.l.b16 %v510
    %v556 = vunpack.c.h.b16 %v510
    %v557 = vunpack.c.l.b16 %v511
    %v558 = vunpack.c.h.b16 %v511
    %v559 = vunpack.c.l.b16 %v512
    %v560 = vunpack.c.h.b16 %v512
    %v561 = vunpack.c.l.b16 %v513
    %v562 = vunpack.c.h.b16 %v513
    %v563 = vunpack.c.l.b16 %v514
    %v564 = vunpack.c.h.b16 %v514
    %v565 = vpack.c.b16 %v535, %v533
    %v566 = vpack.c.b16 %v536, %v534
    %v567 = vpack.c.b16 %v539, %v537
    %v568 = vpack.c.b16 %v540, %v538
    %v569 = vpack.c.b16 %v543, %v541
    %v570 = vpack.c.b16 %v544, %v542
    %v571 = vpack.c.b16 %v547, %v545
    %v572 = vpack.c.b16 %v548, %v546
    %v573 = vpack.c.b16 %v551, %v549
    %v574 = vpack.c.b16 %v552, %v550
    %v575 = vpack.c.b16 %v555, %v553
    %v576 = vpack.c.b16 %v556, %v554
    %v577 = vpack.c.b16 %v559, %v557
    %v578 = vpack.c.b16 %v560, %v558
    %v579 = vpack.c.b16 %v563, %v561
    %v580 = vpack.c.b16 %v564, %v562
    %597 = vmatpush.bf16.msra.mxu0 %v579
    %598 = vmatpush.bf16.msra.mxu0 %v577
    %599 = vmatpush.bf16.msra.mxu0 %v575
    %600 = vmatpush.bf16.msra.mxu0 %v573
    %601 = vmatpush.bf16.msra.mxu0 %v571
    %602 = vmatpush.bf16.msra.mxu0 %v569
    %603 = vmatpush.bf16.msra.mxu0 %v567
    %604 = vmatpush.bf16.msra.mxu0 %v565
    %605 = vmatmul.bf16.gmra.mxu0 %v498
    %v606 = vpop.f32.mrf.mxu0
    %v607 = vadd.f32 %v515, %v606
    %v608 = vpop.f32.mrf.mxu0
    %v609 = vadd.f32 %v515, %v608
    %610 = vdwg.mxu0
    %611 = vmatpush.bf16.msra.mxu0 %v580
    %612 = vmatpush.bf16.msra.mxu0 %v578
    %613 = vmatpush.bf16.msra.mxu0 %v576
    %614 = vmatpush.bf16.msra.mxu0 %v574
    %615 = vmatpush.bf16.msra.mxu0 %v572
    %616 = vmatpush.bf16.msra.mxu0 %v570
    %617 = vmatpush.bf16.msra.mxu0 %v568
    %618 = vmatpush.bf16.msra.mxu0 %v566
    %619 = vmatmul.bf16.gmra.mxu0 %v498
    %v620 = vpop.f32.mrf.mxu0
    %v621 = vadd.f32 %v516, %v620
    %v622 = vpop.f32.mrf.mxu0
    %v623 = vadd.f32 %v516, %v622
    %624 = vdwg.mxu0
    %v625 = vmul.f32 %v607, %v607
    %v626 = vmul.f32 %v621, %v621
    %v627 = vmul.f32 %v609, %v609
    %v628 = vmul.f32 %v623, %v623
    %v629 = vmul.f32 %v607, %v625
    %v630 = vmul.f32 %v621, %v626
    %v631 = vmul.f32 %v609, %v627
    %v632 = vmul.f32 %v623, %v628
    %v633 = vmul.f32 %v629, 0.044715
    %v634 = vmul.f32 %v630, 0.044715
    %v635 = vmul.f32 %v631, 0.044715
    %v636 = vmul.f32 %v632, 0.044715
    %v637 = vadd.f32 %v607, %v633
    %v638 = vadd.f32 %v621, %v634
    %v639 = vadd.f32 %v609, %v635
    %v640 = vadd.f32 %v623, %v636
    %v641 = vmul.f32 %v637, 0.7978846
    %v642 = vmul.f32 %v638, 0.7978846
    %v643 = vmul.f32 %v639, 0.7978846
    %v644 = vmul.f32 %v640, 0.7978846
    %v645 = vtanh.pop %v641
    %v646 = vtanh.pop %v642
    %v647 = vtanh.pop %v643
    %v648 = vtanh.pop %v644
    %v649 = vadd.f32 %v645, 1.0
    %v650 = vadd.f32 %v646, 1.0
    %v651 = vadd.f32 %v647, 1.0
    %v652 = vadd.f32 %v648, 1.0
    %v653 = vmul.f32 %v649, 0.5
    %v654 = vmul.f32 %v650, 0.5
    %v655 = vmul.f32 %v651, 0.5
    %v656 = vmul.f32 %v652, 0.5
    %v657 = vmul.f32 %v607, %v653
    %v658 = vmul.f32 %v621, %v654
    %v659 = vmul.f32 %v609, %v655
    %v660 = vmul.f32 %v623, %v656
    %v661 = vpack.c.bf16 %v659, %v657
    %v662 = vpack.c.bf16 %v660, %v658
    %v663 = vld [vmem:[%s3] sm:$0xf]
    %v664 = vld [vmem:[%s3 + $0x4] sm:$0xf]
    %v665 = vld [vmem:[%s3 + $0x8] sm:$0xf]
    %v666 = vld [vmem:[%s3 + $0xc] sm:$0xf]
    %v667 = vld [vmem:[%s3 + $0x10] sm:$0xf]
    %v668 = vld [vmem:[%s3 + $0x14] sm:$0xf]
    %v669 = vld [vmem:[%s3 + $0x18] sm:$0xf]
    %v670 = vld [vmem:[%s3 + $0x1c] sm:$0xf]
    %v671 = vld [vmem:[%s3 + $0x20] sm:$0xf]
    %v672 = vld [vmem:[%s3 + $0x24] sm:$0xf]
    %v673 = vld [vmem:[%s3 + $0x28] sm:$0xf]
    %v674 = vld [vmem:[%s3 + $0x2c] sm:$0xf]
    %v675 = vld [vmem:[%s3 + $0x30] sm:$0xf]
    %v676 = vld [vmem:[%s3 + $0x34] sm:$0xf]
    %v677 = vld [vmem:[%s3 + $0x38] sm:$0xf]
    %v678 = vld [vmem:[%s3 + $0x3c] sm:$0xf]
    %v679 = vld [vmem:[%s3 + $0x40] sm:$0xf]
    %v680 = vld [vmem:[%s3 + $0x44] sm:$0xf]
    %v681 = vld [vmem:[%s3 + $0x48] sm:$0xf]
    %v682 = vld [vmem:[%s3 + $0x4c] sm:$0xf]
    %v683 = vld [vmem:[%s3 + $0x50] sm:$0xf]
    %v684 = vld [vmem:[%s3 + $0x54] sm:$0xf]
    %v685 = vld [vmem:[%s3 + $0x58] sm:$0xf]
    %v686 = vld [vmem:[%s3 + $0x5c] sm:$0xf]
    %v687 = vld [vmem:[%s3 + $0x60] sm:$0xf]
    %v688 = vld [vmem:[%s3 + $0x64] sm:$0xf]
    %v689 = vld [vmem:[%s3 + $0x68] sm:$0xf]
    %v690 = vld [vmem:[%s3 + $0x6c] sm:$0xf]
    %v691 = vld [vmem:[%s3 + $0x70] sm:$0xf]
    %v692 = vld [vmem:[%s3 + $0x74] sm:$0xf]
    %v693 = vld [vmem:[%s3 + $0x78] sm:$0xf]
    %v694 = vld [vmem:[%s3 + $0x7c] sm:$0xf]
    %v695 = vperm.slane %v42, 2
    %v728 = vunpack.c.l.b16 %v663
    %v729 = vunpack.c.l.b16 %v664
    %v730 = vunpack.c.l.b16 %v665
    %v731 = vunpack.c.l.b16 %v666
    %v732 = vunpack.c.l.b16 %v667
    %v733 = vunpack.c.l.b16 %v668
    %v734 = vunpack.c.l.b16 %v669
    %v735 = vunpack.c.l.b16 %v670
    %v736 = vunpack.c.l.b16 %v671
    %v737 = vunpack.c.l.b16 %v672
    %v738 = vunpack.c.l.b16 %v673
    %v739 = vunpack.c.l.b16 %v674
    %v740 = vunpack.c.l.b16 %v675
    %v741 = vunpack.c.l.b16 %v676
    %v742 = vunpack.c.l.b16 %v677
    %v743 = vunpack.c.l.b16 %v678
    %v744 = vunpack.c.l.b16 %v679
    %v745 = vunpack.c.l.b16 %v680
    %v746 = vunpack.c.l.b16 %v681
    %v747 = vunpack.c.l.b16 %v682
    %v748 = vunpack.c.l.b16 %v683
    %v749 = vunpack.c.l.b16 %v684
    %v750 = vunpack.c.l.b16 %v685
    %v751 = vunpack.c.l.b16 %v686
    %v752 = vunpack.c.l.b16 %v687
    %v753 = vunpack.c.l.b16 %v688
    %v754 = vunpack.c.l.b16 %v689
    %v755 = vunpack.c.l.b16 %v690
    %v756 = vunpack.c.l.b16 %v691
    %v757 = vunpack.c.l.b16 %v692
    %v758 = vunpack.c.l.b16 %v693
    %v759 = vunpack.c.l.b16 %v694
    %v760 = vpack.c.b16 %v729, %v728
    %v761 = vpack.c.b16 %v731, %v730
    %v762 = vpack.c.b16 %v733, %v732
    %v763 = vpack.c.b16 %v735, %v734
    %v764 = vpack.c.b16 %v737, %v736
    %v765 = vpack.c.b16 %v739, %v738
    %v766 = vpack.c.b16 %v741, %v740
    %v767 = vpack.c.b16 %v743, %v742
    %v768 = vpack.c.b16 %v745, %v744
    %v769 = vpack.c.b16 %v747, %v746
    %v770 = vpack.c.b16 %v749, %v748
    %v771 = vpack.c.b16 %v751, %v750
    %v772 = vpack.c.b16 %v753, %v752
    %v773 = vpack.c.b16 %v755, %v754
    %v774 = vpack.c.b16 %v757, %v756
    %v775 = vpack.c.b16 %v759, %v758
    %792 = vmatpush.bf16.msra.mxu0 %v767
    %793 = vmatpush.bf16.msra.mxu0 %v766
    %794 = vmatpush.bf16.msra.mxu0 %v765
    %795 = vmatpush.bf16.msra.mxu0 %v764
    %796 = vmatpush.bf16.msra.mxu0 %v763
    %797 = vmatpush.bf16.msra.mxu0 %v762
    %798 = vmatpush.bf16.msra.mxu0 %v761
    %799 = vmatpush.bf16.msra.mxu0 %v760
    %800 = vmatmul.bf16.gmra.mxu0 %v661
    %v801 = vpop.f32.mrf.mxu0
    %v802 = vadd.f32 %v695, %v801
    %v803 = vpop.f32.mrf.mxu0
    %v804 = vadd.f32 %v695, %v803
    %805 = vdwg.mxu0
    %806 = vmatpush.bf16.msra.mxu0 %v775
    %807 = vmatpush.bf16.msra.mxu0 %v774
    %808 = vmatpush.bf16.msra.mxu0 %v773
    %809 = vmatpush.bf16.msra.mxu0 %v772
    %810 = vmatpush.bf16.msra.mxu0 %v771
    %811 = vmatpush.bf16.msra.mxu0 %v770
    %812 = vmatpush.bf16.msra.mxu0 %v769
    %813 = vmatpush.bf16.msra.mxu0 %v768
    %814 = vmatmul.bf16.gmra.mxu0 %v662
    %v815 = vpop.f32.mrf.mxu0
    %v816 = vadd.f32 %v802, %v815
    %v817 = vpop.f32.mrf.mxu0
    %v818 = vadd.f32 %v804, %v817
    %819 = vdwg.mxu0
    %v820 = vadd.f32 %v496, %v816
    %v821 = vadd.f32 %v497, %v818
    %822 = vadd.xlane.f32.xlu0 %v820
    %v823 = vpop.xlane.xlu0 %822
    %824 = vadd.xlane.f32.xlu0 %v821
    %v825 = vpop.xlane.xlu0 %824
    %v826 = vmul.f32 %v823, %v455
    %v827 = vmul.f32 %v825, %v455
    %v828 = vsub.f32 %v820, %v826
    %v829 = vsub.f32 %v821, %v827
    %v830 = vmul.f32 %v828, %v828
    %v831 = vmul.f32 %v829, %v829
    %832 = vadd.xlane.f32.xlu0 %v830
    %v833 = vpop.xlane.xlu0 %832
    %834 = vadd.xlane.f32.xlu0 %v831
    %v835 = vpop.xlane.xlu0 %834
    %v836 = vmul.f32 %v833, %v455
    %v837 = vmul.f32 %v835, %v455
    %v838 = vadd.f32 %v836, 1e-05
    %v839 = vadd.f32 %v837, 1e-05
    %v840 = vrsqrt.pop %v838
    %v841 = vmul.f32 %v840, %v838
    %v842 = vmul.f32 %v841, %v840
    %v843 = vmul.f32 0.5, %v842
    %v844 = vsub.f32 1.5, %v843
    %v845 = vmul.f32 %v840, %v844
    %vm846 = vweird.f32 %v838
    %vm847 = vweird.f32 %v840
    %vm848 = vmor %vm846, %vm847
    %v849 = vsel %vm848, %v840, %v845
    %v850 = vrsqrt.pop %v839
    %v851 = vmul.f32 %v850, %v839
    %v852 = vmul.f32 %v851, %v850
    %v853 = vmul.f32 0.5, %v852
    %v854 = vsub.f32 1.5, %v853
    %v855 = vmul.f32 %v850, %v854
    %vm856 = vweird.f32 %v839
    %vm857 = vweird.f32 %v850
    %vm858 = vmor %vm856, %vm857
    %v859 = vsel %vm858, %v850, %v855
    %v860 = vmul.f32 %v828, %v849
    %v861 = vmul.f32 %v829, %v859
    %v862 = vperm.slane %v40, 3
    %v863 = vmul.f32 %v860, %v862
    %v864 = vmul.f32 %v861, %v862
    %v865 = vperm.slane %v41, 3
    %v866 = vadd.f32 %v863, %v865
    %v867 = vadd.f32 %v864, %v865
    %v868 = vperm.slane %v42, 3
    %v869 = vmul.f32 %v866, %v868
    %v870 = vmul.f32 %v867, %v868
    %871 = vadd.xlane.f32.xlu0 %v869
    %v872 = vpop.xlane.xlu0 %871
    %873 = vadd.xlane.f32.xlu0 %v870
    %v874 = vpop.xlane.xlu0 %873
    %v876 = vrot.slane %v41, 4
    %s877 = vtos %v876
    %v878 = vstv %s877
    %v880 = vadd.f32 %v872, %v878
    %v881 = vadd.f32 %v874, %v878
    %v884 = vlaneseq
    %v885 = vand.u32 %v884, 127
    %v886 = vperm.slane %v880, %v885
    %v887 = vperm.slane %v881, %v885
    %vm888 = vcmask 1041409
    %v889 = vsel %vm888, %v887, %v886
    %vm891 = vcmask 58368
    %v892 = vsel %vm891, %v889, -inf
    %893 = vmax.xlane.f32.xlu0 %v892
    %v894 = vpop.xlane.xlu0 %893
    %v896 = vperm.slane %v894, 0
    %v897 = vperm.slane %v894, 1
    %v900 = vsub.f32 %v880, %v896
    %v901 = vsub.f32 %v881, %v897
    %v902 = vmul.f32 %v900, 1.442695
    %v903 = vpow.pop %v902
    %v904 = vmul.f32 %v901, 1.442695
    %v905 = vpow.pop %v904
    %908 = vset.pattern.permute.xlu0 0
    %909 = vperm.xlu0 %908, %v903
    %v910 = vpop.permute.xlu0 %909
    %911 = vset.pattern.permute.xlu0 0
    %912 = vperm.xlu0 %911, %v905
    %v913 = vpop.permute.xlu0 %912
    %v914 = vperm.slane %v910, %v885
    %v915 = vperm.slane %v913, %v885
    %v916 = vsel %vm888, %v915, %v914
    %v918 = vsel %vm891, %v916, 0.0
    %919 = vadd.xlane.f32.xlu0 %v918
    %v920 = vpop.xlane.xlu0 %919
    %v921 = vrcp.pop %v920
    %v923 = vperm.slane %v921, 0
    %v924 = vperm.slane %v921, 1
    %v927 = vmul.f32 %v903, %v923
    %v928 = vmul.f32 %v905, %v924
    %930 = vset.pattern.permute.xlu0 0
    %931 = vperm.xlu0 %930, %v927
    %v932 = vpop.permute.xlu0 %931
    %935 = vset.pattern.permute.xlu0 0
    %936 = vperm.xlu0 %935, %v928
    %v937 = vpop.permute.xlu0 %936
    %v939 = vmul.f32 %v932, %v866
    %v940 = vmul.f32 %v937, %v867
    %v941 = vrot.slane %v939, 4
    %v942 = vadd.f32 %v939, %v941
    %v943 = vrot.slane %v942, 2
    %v944 = vadd.f32 %v942, %v943
    %v945 = vrot.slane %v944, 1
    %v946 = vadd.f32 %v944, %v945
    %v947 = vrot.slane %v940, 4
    %v948 = vadd.f32 %v940, %v947
    %v949 = vrot.slane %v948, 2
    %v950 = vadd.f32 %v948, %v949
    %v951 = vrot.slane %v950, 1
    %v952 = vadd.f32 %v950, %v951
    %v953 = vpack.c.bf16 %v946, %v946
    %v954 = vpack.c.bf16 %v952, %v952
    %v955 = vld [vmem:[#allocation2 + $0x18] sm:$0xf]
    %v956 = vld [vmem:[#allocation2 + $0x34] sm:$0xf]
    %v957 = vld [vmem:[#allocation2 + $0x50] sm:$0xf]
    %v958 = vld [vmem:[#allocation2 + $0x6c] sm:$0xf]
    %v959 = vld [vmem:[#allocation2 + $0x88] sm:$0xf]
    %v960 = vld [vmem:[#allocation2 + $0xa4] sm:$0xf]
    %v961 = vld [vmem:[#allocation2 + $0xc0] sm:$0xf]
    %v962 = vld [vmem:[#allocation2 + $0xdc] sm:$0xf]
    %v963 = vld [vmem:[#allocation2 + $0xf8] sm:$0xf]
    %v964 = vld [vmem:[#allocation2 + $0x114] sm:$0xf]
    %v965 = vld [vmem:[#allocation2 + $0x130] sm:$0xf]
    %v966 = vld [vmem:[#allocation2 + $0x14c] sm:$0xf]
    %v967 = vld [vmem:[#allocation2 + $0x168] sm:$0xf]
    %v968 = vld [vmem:[#allocation2 + $0x184] sm:$0xf]
    %v969 = vld [vmem:[#allocation2 + $0x1a0] sm:$0xf]
    %v970 = vld [vmem:[#allocation2 + $0x1bc] sm:$0xf]
    %v971 = vperm.slane %v40, 4
    %v974 = vunpack.c.l.b16 %v953
    %v975 = vunpack.c.l.b16 %v954
    %v976 = vsel %vm888, %v975, %v974
    %v977 = vpack.c.b16 %v976, %v976
    %v995 = vunpack.c.l.b16 %v955
    %v996 = vunpack.c.l.b16 %v956
    %v997 = vunpack.c.l.b16 %v957
    %v998 = vunpack.c.l.b16 %v958
    %v999 = vunpack.c.l.b16 %v959
    %v1000 = vunpack.c.l.b16 %v960
    %v1001 = vunpack.c.l.b16 %v961
    %v1002 = vunpack.c.l.b16 %v962
    %v1003 = vunpack.c.l.b16 %v963
    %v1004 = vunpack.c.l.b16 %v964
    %v1005 = vunpack.c.l.b16 %v965
    %v1006 = vunpack.c.l.b16 %v966
    %v1007 = vunpack.c.l.b16 %v967
    %v1008 = vunpack.c.l.b16 %v968
    %v1009 = vunpack.c.l.b16 %v969
    %v1010 = vunpack.c.l.b16 %v970
    %v1011 = vpack.c.b16 %v996, %v995
    %v1012 = vpack.c.b16 %v998, %v997
    %v1013 = vpack.c.b16 %v1000, %v999
    %v1014 = vpack.c.b16 %v1002, %v1001
    %v1015 = vpack.c.b16 %v1004, %v1003
    %v1016 = vpack.c.b16 %v1006, %v1005
    %v1017 = vpack.c.b16 %v1008, %v1007
    %v1018 = vpack.c.b16 %v1010, %v1009
    %1027 = vmatpush.bf16.msra.mxu0 %v1018
    %1028 = vmatpush.bf16.msra.mxu0 %v1017
    %1029 = vmatpush.bf16.msra.mxu0 %v1016
    %1030 = vmatpush.bf16.msra.mxu0 %v1015
    %1031 = vmatpush.bf16.msra.mxu0 %v1014
    %1032 = vmatpush.bf16.msra.mxu0 %v1013
    %1033 = vmatpush.bf16.msra.mxu0 %v1012
    %1034 = vmatpush.bf16.msra.mxu0 %v1011
    %1035 = vmatmul.bf16.gmra.mxu0 %v977
    %v1036 = vpop.f32.mrf.mxu0
    %v1037 = vadd.f32 %v971, %v1036
    %v1038 = vpop.f32.mrf.mxu0
    %1039 = vdwg.mxu0
    %1040 = vst [vmem:[#allocation5] sm:$0x3] %v1037
    // Predicated region
    $region26: #{roberta_attention_forward.1} parent=1 // pred_check
      _
    $region27: #{roberta_attention_forward.1} parent=1 // pred_check_branch
      %1042 = sbr.rel (0) target = $region29
    $region28: #{roberta_attention_forward.1} parent=1 // pred_region
      %1044 = vsyncadd [#allocation4], 0
      %s1046 = sshll.u32 [#allocation5], 4
      %s1047 = int_to_ptr.vmem [resolvable:$true] %s1046
      %s1048 = sshll.u32 %s5, 4
      %s1049 = int_to_ptr.hbm [resolvable:$true] %s1048
      %1051 = dma.vmem_to_hbm [thread:$0]  %s1047, 32, %s1049, [#allocation4]
    $region29: #{roberta_attention_forward.1} parent=1 // pred_fallthru
      _
    // Predicated region
    $region30: #{roberta_attention_forward.1} parent=1 // pred_check
      _
    $region31: #{roberta_attention_forward.1} parent=1 // pred_check_branch
      %1053 = sbr.rel (0) target = $region33
    $region32: #{roberta_attention_forward.1} parent=1 // pred_region
      %1055 = dma.done [#allocation4], 32
    $region33: #{roberta_attention_forward.1} parent=1 // pred_fallthru
      _
    %1056 = vsyncpa [#allocation3], 1
    %1057 = vsyncpa [#allocation4], 1

</llo_original>
